<compile_context>
chip_gen: v7x
topology: tpu7x:2x2x1
jax: 0.10.0
libtpu: 0.0.40
codegen_flags: <defaults>
</compile_context>

<pallas_src>
import math

import numpy as np
import jax
import jax.numpy as jnp
from jax.experimental import pallas as pl
from jax.experimental.pallas import tpu as pltpu


_LANE = 128


# ----------------------------- Pallas kernels ------------------------------ #

def _make_nan_kernel():
    def kernel(x_ref, stats_ref, o_ref):
        # x_ref: (tile_n, tile_f) VMEM (native dtype), stats_ref: (1, tile_f)
        x = x_ref[...].astype(o_ref.dtype)          # fused int->float when needed
        o_ref[...] = jnp.where(jnp.isnan(x), stats_ref[...], x)
    return kernel


def _make_value_kernel(mv):
    mv = float(mv)  # baked-in immediate; weakly typed -> compares in x's dtype

    def kernel(x_ref, stats_ref, o_ref):
        x = x_ref[...].astype(o_ref.dtype)
        o_ref[...] = jnp.where(x == mv, stats_ref[...], x)
    return kernel


# ---------------------------- Tiling heuristics ----------------------------- #

def _round_up(a, m):
    return -(-a // m) * m


def _vmem_budget_bytes():
    """Per-chip scoped VMEM budget (v5e/v6e: 128 MiB physical, v7x: 64 MiB)."""
    try:
        cap = int(pltpu.get_tpu_info().vmem_capacity_bytes)
    except Exception:
        cap = 64 * 1024 * 1024
    return min(cap // 2, 64 * 1024 * 1024)


def _sublane(dtype):
    # 8 sublanes for 32-bit, 16 for bf16/f16, 32 for 8-bit packing.
    return max(8, 32 // jnp.dtype(dtype).itemsize)


def _pick_tiles(n, f, itemsize, sub, block_budget):
    """Pick (tile_n, tile_f); block always fits block_budget."""
    if f <= _LANE:
        tile_f = f                                     # full extent (always legal)
    else:
        f_up = _round_up(f, _LANE)
        # Largest 128-multiple feature tile that still fits with >=sub rows.
        max_f = max(_LANE, (block_budget // (sub * itemsize)) // _LANE * _LANE)
        if f_up <= max_f:
            tile_f = f                                 # full extent in one block
        else:
            tile_f = max_f                             # ragged feature grid

    tile_n = (block_budget // max(1, tile_f * itemsize)) // sub * sub
    tile_n = max(sub, min(tile_n, 8192, _round_up(n, sub)))

    # Megacore (v7x): keep >=2 (target 4) row blocks so the parallel axis can
    # shard across both TensorCores.  No effect on single-TC v5e/v6e.
    target_blocks = 4 if n >= 4 * sub else (2 if n >= 2 * sub else 1)
    if target_blocks > 1:
        tile_n = min(tile_n, max(sub, _round_up(-(-n // target_blocks), sub)))
    return tile_n, tile_f


# ------------------------------ pallas_call --------------------------------- #

def _run_impute(x, stats_row, missing=None):
    """x: (n, f) row-major; stats_row: (1, f) in the output dtype."""
    n, f = x.shape
    out_dtype = stats_row.dtype
    in_isz = jnp.dtype(x.dtype).itemsize
    out_isz = jnp.dtype(out_dtype).itemsize
    itemsize = max(in_isz, out_isz)
    sub = max(_sublane(x.dtype), _sublane(out_dtype))

    budget = _vmem_budget_bytes()
    # in + out double-buffered (~4 blocks live) + tiny stats + headroom.
    block_budget = max(sub * _LANE * itemsize, budget // 6)

    tile_n, tile_f = _pick_tiles(n, f, itemsize, sub, block_budget)
    grid = (pl.cdiv(n, tile_n), pl.cdiv(f, tile_f))

    x_spec = pl.BlockSpec((tile_n, tile_f), lambda i, j: (i, j))
    s_spec = pl.BlockSpec((1, tile_f), lambda i, j: (0, j))
    o_spec = pl.BlockSpec((tile_n, tile_f), lambda i, j: (i, j))

    kernel = _make_nan_kernel() if missing is None else _make_value_kernel(missing)

    cost = pl.CostEstimate(
        flops=n * f,
        transcendentals=0,
        bytes_accessed=n * f * (in_isz + out_isz) + f * out_isz,
    )

    return pl.pallas_call(
        kernel,
        out_shape=jax.ShapeDtypeStruct((n, f), out_dtype),
        grid_spec=pltpu.PrefetchScalarGridSpec(
            num_scalar_prefetch=0,
            grid=grid,
            in_specs=[x_spec, s_spec],
            out_specs=o_spec,
        ),
        compiler_params=pltpu.CompilerParams(
            dimension_semantics=("parallel", "parallel"),
            vmem_limit_bytes=budget,
        ),
        cost_estimate=cost,
    )(x, stats_row)


# ------------------------------- Wrapper ------------------------------------ #

class SimpleImputerPallas:
    """JAX/Pallas equivalent of hummingbird's SimpleImputer torch module."""

    def __init__(self, statistics, missing_values=np.nan, strategy="mean"):
        stats = np.asarray([float(s) for s in statistics], dtype=np.float32)
        b_mask = np.logical_not(np.isnan(stats))
        i_mask = [i for i in range(len(b_mask)) if b_mask[i]]
        self.do_mask = (strategy == "constant") or bool(np.all(b_mask))
        self.mask = np.asarray([] if self.do_mask else i_mask, dtype=np.int32)
        self.replace_values = jnp.asarray(stats.reshape(1, -1))  # (1, F) f32
        self.is_nan = (isinstance(missing_values, str) and missing_values == "NaN") or (
            isinstance(missing_values, (float, np.floating)) and np.isnan(missing_values))
        if not self.is_nan:
            self.missing_values = float(missing_values)  # baked into the kernel

    def __call__(self, x):
        x = jnp.asarray(x)
        # Integer inputs: keep them integer on the way in (the int->f32 cast is
        # fused into the kernel); output is f32 as in the torch reference.
        out_dtype = x.dtype if jnp.issubdtype(x.dtype, jnp.floating) else jnp.float32
        stats = self.replace_values.astype(out_dtype)

        if self.is_nan and not self.do_mask:
            # NOTE: torch imputes the full array then index_selects columns.
            # NaN-stat columns would be imputed with NaN and then dropped, so
            # gathering kept columns *before* imputation is equivalent.
            # TODO(synk): fuse this static column gather into the kernel
            # (in-kernel lane gather) to save one HBM pass on this edge path.
            mask = jnp.asarray(self.mask)
            x = jnp.take(x, mask, axis=1)
            stats = jnp.take(stats, mask, axis=1)
            if x.shape[1] == 0:
                return x.astype(out_dtype)

        n, f = x.shape
        # Lane-densify: view (n, f) as (n//k, k*f) so the last dim is a
        # multiple of 128 (unmasked vector stores).  Only when the reshape is
        # free (no padding pass): k = 128 // gcd(f, 128) and n % k == 0.
        k = _LANE // math.gcd(f, _LANE)
        densified = (k > 1) and (n > 0) and (n % k == 0)
        if densified:
            x = x.reshape(n // k, k * f)
            stats = jnp.tile(stats, (1, k))

        out = _run_impute(x, stats, None if self.is_nan else self.missing_values)

        if densified:
            out = out.reshape(n, f)
        return out


# --------------------------------- main ------------------------------------- #

if __name__ == "__main__":
    key = jax.random.PRNGKey(0)
    N, F = 16, 32

    k1, k2 = jax.random.split(key)
    x = jax.random.normal(k1, (N, F), dtype=jnp.float32)
    nan_mask = jax.random.uniform(k2, (N, F)) < 0.2
    x_nan = jnp.where(nan_mask, jnp.nan, x)

    # Deterministic per-feature statistics (what sklearn would have fit).
    stats = np.arange(F, dtype=np.float32) * 0.5 + 1.0

    # --- is_nan == True, do_mask == True path -------------------------------
    imp = SimpleImputerPallas(statistics=stats, missing_values=np.nan,
                              strategy="mean")
    out = jax.block_until_ready(imp(x_nan))
    ref = jnp.where(jnp.isnan(x_nan), jnp.asarray(stats)[None, :], x_nan)
    assert out.shape == (N, F) and out.dtype == jnp.float32
    np.testing.assert_allclose(np.asarray(out), np.asarray(ref), rtol=0, atol=0)
    assert not np.any(np.isnan(np.asarray(out)))

    # --- is_nan == False path (sentinel missing value, e.g. -1) -------------
    x_sent = jnp.where(nan_mask, jnp.float32(-1.0), x)
    imp2 = SimpleImputerPallas(statistics=stats, missing_values=-1.0,
                               strategy="mean")
    out2 = jax.block_until_ready(imp2(x_sent))
    ref2 = jnp.where(x_sent == -1.0, jnp.asarray(stats)[None, :], x_sent)
    np.testing.assert_allclose(np.asarray(out2), np.asarray(ref2), rtol=0, atol=0)

    # --- is_nan == True, do_mask == False (NaN statistic column dropped) ----
    stats_nan = stats.copy()
    stats_nan[3] = np.nan
    imp3 = SimpleImputerPallas(statistics=stats_nan, missing_values=np.nan,
                               strategy="mean")
    out3 = jax.block_until_ready(imp3(x_nan))
    full3 = jnp.where(jnp.isnan(x_nan), jnp.asarray(stats_nan)[None, :], x_nan)
    keep = np.asarray([i for i in range(F) if i != 3], dtype=np.int32)
    ref3 = jnp.take(full3, jnp.asarray(keep), axis=1)
    assert out3.shape == (N, F - 1)
    np.testing.assert_allclose(np.asarray(out3), np.asarray(ref3), rtol=0, atol=0)

    # --- odd N, non-128-multiple F (exercise ragged grid / full-F block) ----
    N2, F2 = 37, 200
    k3, k4 = jax.random.split(k2)
    x_big = jax.random.normal(k3, (N2, F2), dtype=jnp.float32)
    nan_big = jax.random.uniform(k4, (N2, F2)) < 0.3
    x_big = jnp.where(nan_big, jnp.nan, x_big)
    stats_big = np.linspace(-1.0, 1.0, F2).astype(np.float32)
    imp4 = SimpleImputerPallas(statistics=stats_big, missing_values=np.nan,
                               strategy="mean")
    out4 = jax.block_until_ready(imp4(x_big))
    ref4 = jnp.where(jnp.isnan(x_big), jnp.asarray(stats_big)[None, :], x_big)
    np.testing.assert_allclose(np.asarray(out4), np.asarray(ref4), rtol=0, atol=0)

    # --- bf16 input preserved (half the HBM bytes on the hot path) ----------
    x_bf16 = jnp.where(nan_mask, jnp.nan, x).astype(jnp.bfloat16)
    out5 = jax.block_until_ready(imp(x_bf16))
    ref5 = jnp.where(jnp.isnan(x_bf16),
                     jnp.asarray(stats)[None, :].astype(jnp.bfloat16), x_bf16)
    assert out5.dtype == jnp.bfloat16
    np.testing.assert_allclose(np.asarray(out5, dtype=np.float32),
                               np.asarray(ref5, dtype=np.float32), rtol=0, atol=0)

    # --- integer input, value path (int->f32 convert fused into the kernel) -
    x_int = (jnp.arange(N * F, dtype=jnp.int32).reshape(N, F) % 7) - 1  # some -1s
    out6 = jax.block_until_ready(imp2(x_int))
    xf = x_int.astype(jnp.float32)
    ref6 = jnp.where(xf == -1.0, jnp.asarray(stats)[None, :], xf)
    assert out6.dtype == jnp.float32
    np.testing.assert_allclose(np.asarray(out6), np.asarray(ref6), rtol=0, atol=0)

    print("KERNEL_OK")
</pallas_src>

<mosaic_0001>
module attributes {stable_mosaic.version = 11 : i64} {
  func.func @kernel(%arg0: i32, %arg1: i32, %arg2: memref<8x128xf32, #tpu.memory_space<vmem>>, %arg3: memref<1x128xf32, #tpu.memory_space<vmem>>, %arg4: memref<8x128xf32, #tpu.memory_space<vmem>>) attributes {dimension_semantics = [#tpu.dimension_semantics<parallel>, #tpu.dimension_semantics<parallel>], iteration_bounds = array<i64: 1, 1>, scalar_prefetch = 0 : i64, scratch_operands = 0 : i64, tpu.core_type = #tpu.core_type<tc>, window_params = [{transform_indices = @transform_0, window_bounds = array<i64: 8, 128>}, {transform_indices = @transform_1, window_bounds = array<i64: 1, 128>}, {transform_indices = @transform_2, window_bounds = array<i64: 8, 128>}]} {
    %c0 = arith.constant 0 : index
    %c0_0 = arith.constant 0 : index
    %0 = vector.load %arg2[%c0, %c0_0] : memref<8x128xf32, #tpu.memory_space<vmem>>, vector<8x128xf32>
    %1 = arith.cmpf one, %0, %0 : vector<8x128xf32>
    %c0_1 = arith.constant 0 : index
    %c0_2 = arith.constant 0 : index
    %2 = vector.load %arg3[%c0_1, %c0_2] : memref<1x128xf32, #tpu.memory_space<vmem>>, vector<1x128xf32>
    %3 = vector.shape_cast %2 : vector<1x128xf32> to vector<1x128xf32>
    %4 = vector.broadcast %3 : vector<1x128xf32> to vector<8x128xf32>
    %5 = arith.select %1, %4, %0 : vector<8x128xi1>, vector<8x128xf32>
    %c0_3 = arith.constant 0 : index
    %c0_4 = arith.constant 0 : index
    %6 = vector.load %arg4[%c0_3, %c0_4] : memref<8x128xf32, #tpu.memory_space<vmem>>, vector<8x128xf32>
    tpu.vector_store %arg4[%c0_3, %c0_4], %5 {strides = array<i32>} : memref<8x128xf32, #tpu.memory_space<vmem>>, vector<8x128xf32>,
    return
  }
  func.func @transform_0(%arg0: i32, %arg1: i32) -> (i32, i32) {
    %c0_i32 = arith.constant 0 : i32
    return %arg0, %arg1 : i32, i32
  }
  func.func @transform_1(%arg0: i32, %arg1: i32) -> (i32, i32) {
    %c0_i32 = arith.constant 0 : i32
    %c0_i32_0 = arith.constant 0 : i32
    return %c0_i32, %arg1 : i32, i32
  }
  func.func @transform_2(%arg0: i32, %arg1: i32) -> (i32, i32) {
    %c0_i32 = arith.constant 0 : i32
    return %arg0, %arg1 : i32, i32
  }
}

</mosaic_0001>

<llo_original>
// kernel: tpu_custom_call.1
$region0: #{tpu_custom_call.1}
  #allocation0 [shape = 'u32[]', space=smem, size = 0x4, offset = 0x4, fixed_abs, tag = 'smem constant byte address 0x4 - core index']
  #allocation1 [shape = 'u32[144,128]{1,0:T(1,128)}', space=vmem, size = 0x12000, scoped, tag = 'internal scratch']
  %s0 = inlined_call_operand.hbm [shape: f32[4,128], index: 0, kind: input, shape index: {}]
  %s1 = inlined_call_operand.vmem [shape: f32[1,128], index: 1, kind: input, shape index: {}]
  %s2 = inlined_call_operand.hbm [shape: f32[4,128], index: 2, kind: output, shape index: {}]
  %s3 = sld [smem:[#allocation0]]
  $region22: #{tpu_custom_call.1} parent=0
    _
  %s5 = ssub.s32 1, %s3
  %s6 = scalar_select 0, %s5, %s3
  $region1: #{tpu_custom_call.1} parent=0
    #allocation2 [shape = 'u8[4096]{0}', space=vmem, size = 0x1000, scoped, tag = 'input window, operand 0, single buffered']
    #allocation3 [shape = 's32[1]{0}', space=sflag, size = 0x4, scoped, tag = 'scoped memory for tpu_custom_call.1']
    #allocation4 [shape = 's32[1]{0}', space=sflag, size = 0x4, scoped, tag = 'scoped memory for tpu_custom_call.1']
    #allocation5 [shape = 'u8[4096]{0}', space=vmem, size = 0x1000, scoped, tag = 'output window, operand 0, single buffered']
    %7 = vsyncpa [#allocation3], 0
    %8 = vsyncpa [#allocation4], 0
    // Predicated region
    $region2: #{tpu_custom_call.1} parent=1 // pred_check
      _
    $region3: #{tpu_custom_call.1} parent=1 // pred_check_branch
      %10 = sbr.rel (0) target = $region5
    $region4: #{tpu_custom_call.1} parent=1 // pred_region
      %s12 = ssub.s32 128, 64
      %13 = vsyncadd [#allocation3], %s12
      %s14 = sshll.u32 [#allocation2], 4
      %s15 = int_to_ptr.vmem [resolvable:$true] %s14
      %20 = dma.hbm_to_vmem [thread:$0]  %s0, 64, %s15, [#allocation3], 64, 64, 4
    $region5: #{tpu_custom_call.1} parent=1 // pred_fallthru
      _
    // Predicated region
    $region6: #{tpu_custom_call.1} parent=1 // pred_check
      _
    $region7: #{tpu_custom_call.1} parent=1 // pred_check_branch
      %22 = sbr.rel (0) target = $region9
    $region8: #{tpu_custom_call.1} parent=1 // pred_region
      _
    $region9: #{tpu_custom_call.1} parent=1 // pred_fallthru
      _
    // Predicated region
    $region10: #{tpu_custom_call.1} parent=1 // pred_check
      _
    $region11: #{tpu_custom_call.1} parent=1 // pred_check_branch
      %24 = sbr.rel (0) target = $region13
    $region12: #{tpu_custom_call.1} parent=1 // pred_region
      %25 = dma.done [#allocation3], 128
    $region13: #{tpu_custom_call.1} parent=1 // pred_fallthru
      _
    %v26 = vld [vmem:[#allocation2] sm:$0xff]
    %vm27 = vcmp.ne.f32.partialorder %v26, %v26
    %v28 = vld [vmem:[%s1] sm:$0x1]
    %v30 = vlaneseq
    %v31 = vshrl.u32 %v30, 7
    %v32 = vsub.s32 0, %v31
    %v33 = vrot.slane %v28, %v32
    %v35 = vsel %vm27, %v33, %v26
    %36 = vst [vmem:[#allocation5] sm:$0xff] %v35
    // Predicated region
    $region14: #{tpu_custom_call.1} parent=1 // pred_check
      _
    $region15: #{tpu_custom_call.1} parent=1 // pred_check_branch
      %38 = sbr.rel (0) target = $region17
    $region16: #{tpu_custom_call.1} parent=1 // pred_region
      %s40 = ssub.s32 128, 64
      %41 = vsyncadd [#allocation4], %s40
      %s42 = sshll.u32 [#allocation5], 4
      %s43 = int_to_ptr.vmem [resolvable:$true] %s42
      %48 = dma.vmem_to_hbm [thread:$0]  %s43, 64, %s2, [#allocation4], 64, 64, 4
    $region17: #{tpu_custom_call.1} parent=1 // pred_fallthru
      _
    // Predicated region
    $region18: #{tpu_custom_call.1} parent=1 // pred_check
      _
    $region19: #{tpu_custom_call.1} parent=1 // pred_check_branch
      %50 = sbr.rel (0) target = $region21
    $region20: #{tpu_custom_call.1} parent=1 // pred_region
      %51 = dma.done [#allocation4], 128
    $region21: #{tpu_custom_call.1} parent=1 // pred_fallthru
      _
    %52 = vsyncpa [#allocation3], 1
    %53 = vsyncpa [#allocation4], 1

</llo_original>
